<compile_context>
chip_gen: v6e
topology: v6e:2x2x1
jax: 0.10.0
libtpu: 0.0.40
codegen_flags: <defaults>
</compile_context>

<pallas_src>
import functools

import jax
import jax.numpy as jnp
from jax.experimental import pallas as pl
from jax.experimental.pallas import tpu as pltpu


def _glu_kernel(x_ref, w1_ref, w2_ref, b1_ref, b2_ref, o_ref,
                acc1_ref, acc2_ref):
    # Grid axes: (i = M tile, j = N tile, k = K chunk [innermost, reduction]).
    k = pl.program_id(2)

    @pl.when(k == 0)
    def _():
        acc1_ref[...] = jnp.zeros_like(acc1_ref)
        acc2_ref[...] = jnp.zeros_like(acc2_ref)

    x = x_ref[...]
    acc1_ref[...] += jnp.dot(x, w1_ref[...], preferred_element_type=jnp.float32)
    acc2_ref[...] += jnp.dot(x, w2_ref[...], preferred_element_type=jnp.float32)

    @pl.when(k == pl.num_programs(2) - 1)
    def _():
        a = acc1_ref[...] + b1_ref[...].astype(jnp.float32)   # linear1 out
        g = acc2_ref[...] + b2_ref[...].astype(jnp.float32)   # gate (linear2)
        o_ref[...] = (a * jax.nn.sigmoid(g)).astype(o_ref.dtype)


def _pick_tile(dim, candidates):
    """Largest candidate that evenly divides `dim`, else the full dim."""
    for c in candidates:
        if dim >= c and dim % c == 0:
            return c
    return dim


@functools.partial(jax.jit, static_argnames=("tm",))
def glu_forward(x, w1, b1, w2, b2, *, tm=256):
    """x: [B, S, K]; w*: [K, N]; b*: [1, N] -> [B, S, N]."""
    B, S, K = x.shape
    N = w1.shape[1]
    M = B * S
    x2d = x.reshape(M, K)

    # --- tile selection (static under jit) ----------------------------------
    tm_eff = min(tm, M)                                    # rows per step
    tn = _pick_tile(N, (512, 256, 128))                    # output cols per step
    tk = K if K <= 1024 else _pick_tile(K, (1024, 512, 256))

    grid = (pl.cdiv(M, tm_eff), N // tn, pl.cdiv(K, tk))

    itemsize = jnp.dtype(x.dtype).itemsize
    cost = pl.CostEstimate(
        flops=2 * M * K * 2 * N + 6 * M * N,
        transcendentals=M * N,
        bytes_accessed=(M * K + 2 * K * N + 2 * N + M * N) * itemsize,
    )

    out = pl.pallas_call(
        _glu_kernel,
        out_shape=jax.ShapeDtypeStruct((M, N), x.dtype),
        grid_spec=pltpu.PrefetchScalarGridSpec(
            num_scalar_prefetch=0,
            grid=grid,
            in_specs=[
                pl.BlockSpec((tm_eff, tk), lambda i, j, k: (i, k)),   # x tile
                pl.BlockSpec((tk, tn), lambda i, j, k: (k, j)),       # W1 tile
                pl.BlockSpec((tk, tn), lambda i, j, k: (k, j)),       # W2 tile
                pl.BlockSpec((1, tn), lambda i, j, k: (0, j)),        # b1 tile
                pl.BlockSpec((1, tn), lambda i, j, k: (0, j)),        # b2 tile
            ],
            out_specs=pl.BlockSpec((tm_eff, tn), lambda i, j, k: (i, j)),
            scratch_shapes=[
                pltpu.VMEM((tm_eff, tn), jnp.float32),   # acc for linear1
                pltpu.VMEM((tm_eff, tn), jnp.float32),   # acc for linear2
            ],
        ),
        compiler_params=pltpu.CompilerParams(
            dimension_semantics=("parallel", "parallel", "arbitrary"),
        ),
        cost_estimate=cost,
    )(x2d, w1, w2, b1, b2)
    return out.reshape(B, S, N)


def init_glu_params(key, infeatures, outfeatures, dtype=jnp.float32):
    """Deterministic init mirroring nn.Linear default (uniform(+/- 1/sqrt(in)))."""
    k1, k2, k3, k4 = jax.random.split(key, 4)
    bound = 1.0 / (infeatures ** 0.5)
    # PyTorch stores weight as [out, in]; we keep [in, out] so the kernel does x @ W.
    w1 = jax.random.uniform(k1, (infeatures, outfeatures), dtype, -bound, bound)
    b1 = jax.random.uniform(k2, (1, outfeatures), dtype, -bound, bound)
    w2 = jax.random.uniform(k3, (infeatures, outfeatures), dtype, -bound, bound)
    b2 = jax.random.uniform(k4, (1, outfeatures), dtype, -bound, bound)
    return w1, b1, w2, b2


def _reference(x, w1, b1, w2, b2):
    return (x @ w1 + b1) * jax.nn.sigmoid(x @ w2 + b2)


if __name__ == "__main__":
    key = jax.random.PRNGKey(0)

    # --- primary small test (matches the module spec shapes) ----------------
    kx, kp = jax.random.split(key)
    batch, seq, infeatures, outfeatures = 2, 8, 32, 32
    x = jax.random.normal(kx, (batch, seq, infeatures), jnp.float32)
    w1, b1, w2, b2 = init_glu_params(kp, infeatures, outfeatures)

    out = glu_forward(x, w1, b1, w2, b2)
    jax.block_until_ready(out)
    ref = _reference(x, w1, b1, w2, b2)
    assert out.shape == (batch, seq, outfeatures)
    assert jnp.allclose(out, ref, atol=1e-5, rtol=1e-5)

    # --- secondary test: exercises M / N / K tiling paths --------------------
    kx2, kp2 = jax.random.split(jax.random.PRNGKey(1))
    b2_, s2_, in2_, out2_ = 2, 256, 2048, 512   # M=512 (2 M-tiles), K tiled, N=512
    x2 = jax.random.normal(kx2, (b2_, s2_, in2_), jnp.float32)
    w1b, b1b, w2b, b2b = init_glu_params(kp2, in2_, out2_)

    out_big = glu_forward(x2, w1b, b1b, w2b, b2b)
    jax.block_until_ready(out_big)
    ref_big = _reference(x2, w1b, b1b, w2b, b2b)
    assert jnp.allclose(out_big, ref_big, atol=1e-3, rtol=1e-3)

    print("KERNEL_OK")
</pallas_src>

<mosaic_0001>
module attributes {stable_mosaic.version = 11 : i64} {
  func.func @_glu_kernel(%arg0: i32, %arg1: i32, %arg2: i32, %arg3: memref<16x32xf32, #tpu.memory_space<vmem>>, %arg4: memref<32x32xf32, #tpu.memory_space<vmem>>, %arg5: memref<32x32xf32, #tpu.memory_space<vmem>>, %arg6: memref<1x32xf32, #tpu.memory_space<vmem>>, %arg7: memref<1x32xf32, #tpu.memory_space<vmem>>, %arg8: memref<16x32xf32, #tpu.memory_space<vmem>>, %arg9: memref<16x32xf32, #tpu.memory_space<vmem>>, %arg10: memref<16x32xf32, #tpu.memory_space<vmem>>) attributes {dimension_semantics = [#tpu.dimension_semantics<parallel>, #tpu.dimension_semantics<parallel>, #tpu.dimension_semantics<arbitrary>], iteration_bounds = array<i64: 1, 1, 1>, scalar_prefetch = 0 : i64, scratch_operands = 2 : i64, tpu.core_type = #tpu.core_type<tc>, window_params = [{transform_indices = @transform_0, window_bounds = array<i64: 16, 32>}, {transform_indices = @transform_1, window_bounds = array<i64: 32, 32>}, {transform_indices = @transform_2, window_bounds = array<i64: 32, 32>}, {transform_indices = @transform_3, window_bounds = array<i64: 1, 32>}, {transform_indices = @transform_4, window_bounds = array<i64: 1, 32>}, {transform_indices = @transform_5, window_bounds = array<i64: 16, 32>}]} {
    %c0_i32 = arith.constant 0 : i32
    %0 = arith.cmpi eq, %arg2, %c0_i32 : i32
    %1 = arith.extui %0 : i1 to i32
    %c0_i32_0 = arith.constant 0 : i32
    %2 = arith.cmpi ne, %1, %c0_i32_0 : i32
    scf.if %2 {
      %cst_17 = arith.constant 0.000000e+00 : f32
      %17 = vector.broadcast %cst_17 : f32 to vector<16x32xf32>
      %c0_18 = arith.constant 0 : index
      %c0_19 = arith.constant 0 : index
      %18 = vector.load %arg9[%c0_18, %c0_19] : memref<16x32xf32, #tpu.memory_space<vmem>>, vector<16x32xf32>
      tpu.vector_store %arg9[%c0_18, %c0_19], %17 {strides = array<i32>} : memref<16x32xf32, #tpu.memory_space<vmem>>, vector<16x32xf32>,
      %cst_20 = arith.constant 0.000000e+00 : f32
      %19 = vector.broadcast %cst_20 : f32 to vector<16x32xf32>
      %c0_21 = arith.constant 0 : index
      %c0_22 = arith.constant 0 : index
      %20 = vector.load %arg10[%c0_21, %c0_22] : memref<16x32xf32, #tpu.memory_space<vmem>>, vector<16x32xf32>
      tpu.vector_store %arg10[%c0_21, %c0_22], %19 {strides = array<i32>} : memref<16x32xf32, #tpu.memory_space<vmem>>, vector<16x32xf32>,
    } else {
    }
    %c0 = arith.constant 0 : index
    %c0_1 = arith.constant 0 : index
    %3 = vector.load %arg3[%c0, %c0_1] : memref<16x32xf32, #tpu.memory_space<vmem>>, vector<16x32xf32>
    %c0_2 = arith.constant 0 : index
    %c0_3 = arith.constant 0 : index
    %4 = vector.load %arg9[%c0_2, %c0_3] : memref<16x32xf32, #tpu.memory_space<vmem>>, vector<16x32xf32>
    %c0_4 = arith.constant 0 : index
    %c0_5 = arith.constant 0 : index
    %5 = vector.load %arg4[%c0_4, %c0_5] : memref<32x32xf32, #tpu.memory_space<vmem>>, vector<32x32xf32>
    %cst = arith.constant dense<0.000000e+00> : vector<16x32xf32>
    %6 = tpu.matmul %3, %5, %cst {dimension_numbers = #tpu.dot_dimension_numbers<[1], [0], [0], [1], [0, 0, 1, 1], [], []>} : vector<16x32xf32>, vector<32x32xf32>, vector<16x32xf32> -> vector<16x32xf32>
    %7 = arith.addf %4, %6 : vector<16x32xf32>
    %c0_6 = arith.constant 0 : index
    %c0_7 = arith.constant 0 : index
    %8 = vector.load %arg9[%c0_6, %c0_7] : memref<16x32xf32, #tpu.memory_space<vmem>>, vector<16x32xf32>
    tpu.vector_store %arg9[%c0_6, %c0_7], %7 {strides = array<i32>} : memref<16x32xf32, #tpu.memory_space<vmem>>, vector<16x32xf32>,
    %c0_8 = arith.constant 0 : index
    %c0_9 = arith.constant 0 : index
    %9 = vector.load %arg10[%c0_8, %c0_9] : memref<16x32xf32, #tpu.memory_space<vmem>>, vector<16x32xf32>
    %c0_10 = arith.constant 0 : index
    %c0_11 = arith.constant 0 : index
    %10 = vector.load %arg5[%c0_10, %c0_11] : memref<32x32xf32, #tpu.memory_space<vmem>>, vector<32x32xf32>
    %cst_12 = arith.constant dense<0.000000e+00> : vector<16x32xf32>
    %11 = tpu.matmul %3, %10, %cst_12 {dimension_numbers = #tpu.dot_dimension_numbers<[1], [0], [0], [1], [0, 0, 1, 1], [], []>} : vector<16x32xf32>, vector<32x32xf32>, vector<16x32xf32> -> vector<16x32xf32>
    %12 = arith.addf %9, %11 : vector<16x32xf32>
    %c0_13 = arith.constant 0 : index
    %c0_14 = arith.constant 0 : index
    %13 = vector.load %arg10[%c0_13, %c0_14] : memref<16x32xf32, #tpu.memory_space<vmem>>, vector<16x32xf32>
    tpu.vector_store %arg10[%c0_13, %c0_14], %12 {strides = array<i32>} : memref<16x32xf32, #tpu.memory_space<vmem>>, vector<16x32xf32>,
    %c0_i32_15 = arith.constant 0 : i32
    %14 = arith.cmpi eq, %arg2, %c0_i32_15 : i32
    %15 = arith.extui %14 : i1 to i32
    %c0_i32_16 = arith.constant 0 : i32
    %16 = arith.cmpi ne, %15, %c0_i32_16 : i32
    scf.if %16 {
      %c0_17 = arith.constant 0 : index
      %c0_18 = arith.constant 0 : index
      %17 = vector.load %arg9[%c0_17, %c0_18] : memref<16x32xf32, #tpu.memory_space<vmem>>, vector<16x32xf32>
      %c0_19 = arith.constant 0 : index
      %c0_20 = arith.constant 0 : index
      %18 = vector.load %arg6[%c0_19, %c0_20] : memref<1x32xf32, #tpu.memory_space<vmem>>, vector<1x32xf32>
      %19 = vector.broadcast %18 : vector<1x32xf32> to vector<16x32xf32>
      %20 = arith.addf %17, %19 : vector<16x32xf32>
      %c0_21 = arith.constant 0 : index
      %c0_22 = arith.constant 0 : index
      %21 = vector.load %arg10[%c0_21, %c0_22] : memref<16x32xf32, #tpu.memory_space<vmem>>, vector<16x32xf32>
      %c0_23 = arith.constant 0 : index
      %c0_24 = arith.constant 0 : index
      %22 = vector.load %arg7[%c0_23, %c0_24] : memref<1x32xf32, #tpu.memory_space<vmem>>, vector<1x32xf32>
      %23 = vector.broadcast %22 : vector<1x32xf32> to vector<16x32xf32>
      %24 = arith.addf %21, %23 : vector<16x32xf32>
      %25 = arith.negf %24 : vector<16x32xf32>
      %26 = math.exp %25 : vector<16x32xf32>
      %cst_25 = arith.constant 1.000000e+00 : f32
      %27 = vector.broadcast %cst_25 : f32 to vector<16x32xf32>
      %28 = arith.addf %27, %26 : vector<16x32xf32>
      %29 = arith.divf %27, %28 : vector<16x32xf32>
      %30 = arith.mulf %20, %29 : vector<16x32xf32>
      %c0_26 = arith.constant 0 : index
      %c0_27 = arith.constant 0 : index
      %31 = vector.load %arg8[%c0_26, %c0_27] : memref<16x32xf32, #tpu.memory_space<vmem>>, vector<16x32xf32>
      tpu.vector_store %arg8[%c0_26, %c0_27], %30 {strides = array<i32>} : memref<16x32xf32, #tpu.memory_space<vmem>>, vector<16x32xf32>,
    } else {
    }
    return
  }
  func.func @transform_0(%arg0: i32, %arg1: i32, %arg2: i32) -> (i32, i32) {
    %c0_i32 = arith.constant 0 : i32
    return %arg0, %arg2 : i32, i32
  }
  func.func @transform_1(%arg0: i32, %arg1: i32, %arg2: i32) -> (i32, i32) {
    %c0_i32 = arith.constant 0 : i32
    return %arg2, %arg1 : i32, i32
  }
  func.func @transform_2(%arg0: i32, %arg1: i32, %arg2: i32) -> (i32, i32) {
    %c0_i32 = arith.constant 0 : i32
    return %arg2, %arg1 : i32, i32
  }
  func.func @transform_3(%arg0: i32, %arg1: i32, %arg2: i32) -> (i32, i32) {
    %c0_i32 = arith.constant 0 : i32
    %c0_i32_0 = arith.constant 0 : i32
    return %c0_i32, %arg1 : i32, i32
  }
  func.func @transform_4(%arg0: i32, %arg1: i32, %arg2: i32) -> (i32, i32) {
    %c0_i32 = arith.constant 0 : i32
    %c0_i32_0 = arith.constant 0 : i32
    return %c0_i32, %arg1 : i32, i32
  }
  func.func @transform_5(%arg0: i32, %arg1: i32, %arg2: i32) -> (i32, i32) {
    %c0_i32 = arith.constant 0 : i32
    return %arg0, %arg1 : i32, i32
  }
}

</mosaic_0001>

<llo_original>
// kernel: glu_forward.1
$region0: #{glu_forward.1}
  #allocation0 [shape = 'u32[]', space=smem, size = 0x4, offset = 0x4, fixed_abs, tag = 'smem constant byte address 0x4 - core index']
  #allocation1 [shape = 'u32[144,128]{1,0:T(1,128)}', space=vmem, size = 0x12000, scoped, tag = 'internal scratch']
  #allocation2 [shape = 'f32[16,32]{1,0:T(8,128)}', space=vmem, size = 0x2000, scoped, tag = 'scratch operand']
  #allocation3 [shape = 'f32[16,32]{1,0:T(8,128)}', space=vmem, size = 0x2000, scoped, tag = 'scratch operand']
  %s0 = inlined_call_operand.hbm [shape: f32[16,32], index: 0, kind: input, shape index: {}]
  %s1 = inlined_call_operand.hbm [shape: f32[32,32], index: 1, kind: input, shape index: {}]
  %s2 = inlined_call_operand.hbm [shape: f32[32,32], index: 2, kind: input, shape index: {}]
  %s3 = inlined_call_operand.vmem [shape: f32[1,32], index: 3, kind: input, shape index: {}]
  %s4 = inlined_call_operand.vmem [shape: f32[1,32], index: 4, kind: input, shape index: {}]
  %s5 = inlined_call_operand.hbm [shape: f32[16,32], index: 5, kind: output, shape index: {}]
  %s6 = sld [smem:[#allocation0]]
  $region50: #{glu_forward.1} parent=0
    _
  %s8 = ssub.s32 1, %s6
  %s9 = scalar_select 0, %s8, %s6
  $region1: #{glu_forward.1} parent=0
    #allocation4 [shape = 'u8[8192]{0}', space=vmem, size = 0x2000, scoped, tag = 'input window, operand 0, single buffered']
    #allocation5 [shape = 's32[1]{0}', space=sflag, size = 0x4, scoped, tag = 'scoped memory for glu_forward.1']
    #allocation6 [shape = 's32[1]{0}', space=sflag, size = 0x4, scoped, tag = 'scoped memory for glu_forward.1']
    #allocation7 [shape = 'u8[16384]{0}', space=vmem, size = 0x4000, scoped, tag = 'input window, operand 1, single buffered']
    #allocation8 [shape = 's32[1]{0}', space=sflag, size = 0x4, scoped, tag = 'scoped memory for glu_forward.1']
    #allocation9 [shape = 'u8[16384]{0}', space=vmem, size = 0x4000, scoped, tag = 'input window, operand 2, single buffered']
    #allocation10 [shape = 'u8[8192]{0}', space=vmem, size = 0x2000, scoped, tag = 'output window, operand 0, single buffered']
    %10 = vsyncpa [#allocation5], 0
    %11 = vsyncpa [#allocation8], 0
    %12 = vsyncpa [#allocation6], 0
    // Predicated region
    $region2: #{glu_forward.1} parent=1 // pred_check
      _
    $region3: #{glu_forward.1} parent=1 // pred_check_branch
      %14 = sbr.rel (0) target = $region5
    $region4: #{glu_forward.1} parent=1 // pred_region
      %s16 = ssub.s32 256, 256
      %17 = vsyncadd [#allocation5], %s16
      %s18 = sshll.u32 [#allocation4], 4
      %s19 = int_to_ptr.vmem [resolvable:$true] %s18
      %24 = dma.hbm_to_vmem [thread:$0]  %s0, 256, %s19, [#allocation5], 128, 128, 8
    $region5: #{glu_forward.1} parent=1 // pred_fallthru
      _
    // Predicated region
    $region6: #{glu_forward.1} parent=1 // pred_check
      _
    $region7: #{glu_forward.1} parent=1 // pred_check_branch
      %26 = sbr.rel (0) target = $region9
    $region8: #{glu_forward.1} parent=1 // pred_region
      %s28 = ssub.s32 512, 512
      %29 = vsyncadd [#allocation8], %s28
      %s30 = sshll.u32 [#allocation7], 4
      %s31 = int_to_ptr.vmem [resolvable:$true] %s30
      %36 = dma.hbm_to_vmem [thread:$0]  %s1, 512, %s31, [#allocation8], 128, 128, 8
    $region9: #{glu_forward.1} parent=1 // pred_fallthru
      _
    // Predicated region
    $region10: #{glu_forward.1} parent=1 // pred_check
      _
    $region11: #{glu_forward.1} parent=1 // pred_check_branch
      %38 = sbr.rel (0) target = $region13
    $region12: #{glu_forward.1} parent=1 // pred_region
      %s40 = ssub.s32 512, 512
      %41 = vsyncadd [#allocation8], %s40
      %s42 = sshll.u32 [#allocation9], 4
      %s43 = int_to_ptr.vmem [resolvable:$true] %s42
      %48 = dma.hbm_to_vmem [thread:$0]  %s2, 512, %s43, [#allocation8], 128, 128, 8
    $region13: #{glu_forward.1} parent=1 // pred_fallthru
      _
    // Predicated region
    $region14: #{glu_forward.1} parent=1 // pred_check
      _
    $region15: #{glu_forward.1} parent=1 // pred_check_branch
      %50 = sbr.rel (0) target = $region17
    $region16: #{glu_forward.1} parent=1 // pred_region
      _
    $region17: #{glu_forward.1} parent=1 // pred_fallthru
      _
    // Predicated region
    $region18: #{glu_forward.1} parent=1 // pred_check
      _
    $region19: #{glu_forward.1} parent=1 // pred_check_branch
      %52 = sbr.rel (0) target = $region21
    $region20: #{glu_forward.1} parent=1 // pred_region
      _
    $region21: #{glu_forward.1} parent=1 // pred_fallthru
      _
    // Predicated region
    $region22: #{glu_forward.1} parent=1 // pred_check
      _
    $region23: #{glu_forward.1} parent=1 // pred_check_branch
      %54 = sbr.rel (0) target = $region25
    $region24: #{glu_forward.1} parent=1 // pred_region
      %55 = dma.done [#allocation5], 256
    $region25: #{glu_forward.1} parent=1 // pred_fallthru
      _
    // Predicated region
    $region26: #{glu_forward.1} parent=1 // pred_check
      _
    $region27: #{glu_forward.1} parent=1 // pred_check_branch
      %57 = sbr.rel (0) target = $region29
    $region28: #{glu_forward.1} parent=1 // pred_region
      %58 = dma.done [#allocation8], 512
    $region29: #{glu_forward.1} parent=1 // pred_fallthru
      _
    // Predicated region
    $region30: #{glu_forward.1} parent=1 // pred_check
      _
    $region31: #{glu_forward.1} parent=1 // pred_check_branch
      %60 = sbr.rel (0) target = $region33
    $region32: #{glu_forward.1} parent=1 // pred_region
      %61 = dma.done [#allocation8], 512
    $region33: #{glu_forward.1} parent=1 // pred_fallthru
      _
    %p62 = scmp.eq.s32.totalorder 0, 0
    // Predicated region
    $region34: #{glu_forward.1} parent=1 // pred_check
      %p63 = pneg %p62
    $region35: #{glu_forward.1} parent=1 // pred_check_branch
      %65 = sbr.rel (%p63) target = $region37
    $region36: #{glu_forward.1} parent=1 // pred_region
      %vm66 = vcmask 261120
      %67 = vst.msk [vmem:[#allocation2] sm:$0xff] %vm66, 0.0
      %68 = vst.msk [vmem:[#allocation2 + $0x8] sm:$0xff] %vm66, 0.0
      %69 = vst.msk [vmem:[#allocation3] sm:$0xff] %vm66, 0.0
      %70 = vst.msk [vmem:[#allocation3 + $0x8] sm:$0xff] %vm66, 0.0
    $region37: #{glu_forward.1} parent=1 // pred_fallthru
      _
    %v71 = vld [vmem:[#allocation4] sm:$0xff]
    %v72 = vld [vmem:[#allocation4 + $0x8] sm:$0xff]
    %v73 = vld [vmem:[#allocation2] sm:$0xff]
    %v74 = vld [vmem:[#allocation2 + $0x8] sm:$0xff]
    %v75 = vld [vmem:[#allocation7] sm:$0xff]
    %v76 = vld [vmem:[#allocation7 + $0x8] sm:$0xff]
    %v77 = vld [vmem:[#allocation7 + $0x10] sm:$0xff]
    %v78 = vld [vmem:[#allocation7 + $0x18] sm:$0xff]
    %vm79 = vcmask 261120
    %v81 = vsel %vm79, %v71, 0
    %v84 = vsel %vm79, %v72, 0
    %86 = vmatprep.subr.mxu0 0.0
    %87 = vmatpush1.msra.mxu0 0.0
    %88 = vmatprep.subr.mxu0 0.0
    %89 = vmatpush1.msra.mxu0 0.0
    %90 = vmatprep.subr.mxu0 0.0
    %91 = vmatpush1.msra.mxu0 0.0
    %92 = vmatprep.subr.mxu0 0.0
    %93 = vmatpush1.msra.mxu0 0.0
    %94 = vmatprep.subr.mxu0 0.0
    %95 = vmatpush1.msra.mxu0 0.0
    %96 = vmatprep.subr.mxu0 0.0
    %97 = vmatpush1.msra.mxu0 0.0
    %98 = vmatprep.subr.mxu0 0.0
    %99 = vmatpush1.msra.mxu0 0.0
    %100 = vmatprep.subr.mxu0 0.0
    %101 = vmatpush1.msra.mxu0 0.0
    %102 = vmatprep.subr.mxu0 0.0
    %103 = vmatpush1.msra.mxu0 0.0
    %104 = vmatprep.subr.mxu0 0.0
    %105 = vmatpush1.msra.mxu0 0.0
    %106 = vmatprep.subr.mxu0 0.0
    %107 = vmatpush1.msra.mxu0 0.0
    %108 = vmatprep.subr.mxu0 0.0
    %109 = vmatpush1.msra.mxu0 0.0
    %110 = vmatprep.subr.mxu0 0.0
    %111 = vmatpush1.msra.mxu0 %v78
    %112 = vmatprep.subr.mxu0 0.0
    %113 = vmatpush1.msra.mxu0 %v77
    %114 = vmatprep.subr.mxu0 0.0
    %115 = vmatpush1.msra.mxu0 %v76
    %116 = vmatprep.subr.mxu0 0.0
    %117 = vmatpush1.msra.mxu0 %v75
    %118 = vmatprep.subr.mxu0 0.0
    %119 = vmatpush2.msra.mxu0 0.0
    %120 = vmatprep.subr.mxu0 0.0
    %121 = vmatpush2.msra.mxu0 0.0
    %122 = vmatprep.subr.mxu0 0.0
    %123 = vmatpush2.msra.mxu0 0.0
    %124 = vmatprep.subr.mxu0 0.0
    %125 = vmatpush2.msra.mxu0 0.0
    %126 = vmatprep.subr.mxu0 0.0
    %127 = vmatpush2.msra.mxu0 0.0
    %128 = vmatprep.subr.mxu0 0.0
    %129 = vmatpush2.msra.mxu0 0.0
    %130 = vmatprep.subr.mxu0 0.0
    %131 = vmatpush2.msra.mxu0 0.0
    %132 = vmatprep.subr.mxu0 0.0
    %133 = vmatpush2.msra.mxu0 0.0
    %134 = vmatprep.subr.mxu0 0.0
    %135 = vmatpush2.msra.mxu0 0.0
    %136 = vmatprep.subr.mxu0 0.0
    %137 = vmatpush2.msra.mxu0 0.0
    %138 = vmatprep.subr.mxu0 0.0
    %139 = vmatpush2.msra.mxu0 0.0
    %140 = vmatprep.subr.mxu0 0.0
    %141 = vmatpush2.msra.mxu0 0.0
    %142 = vmatprep.subr.mxu0 0.0
    %143 = vmatpush2.msra.mxu0 0.0
    %144 = vmatprep.subr.mxu0 0.0
    %145 = vmatpush2.msra.mxu0 0.0
    %146 = vmatprep.subr.mxu0 0.0
    %147 = vmatpush2.msra.mxu0 0.0
    %148 = vmatprep.subr.mxu0 0.0
    %149 = vmatpush2.msra.mxu0 0.0
    %150 = vmatprep.mubr.f32.mxu0 0.0
    %151 = vmatmul.mubr.f32.gmra.mxu0 %v81
    %v152 = vpop.f32.mrf.mxu0
    %v153 = vadd.f32 0.0, %v152
    %v154 = vpop.f32.mrf.mxu0
    %155 = vmatprep.mubr.f32.mxu0 0.0
    %156 = vmatmul.mubr.f32.gmra.mxu0 %v84
    %v157 = vpop.f32.mrf.mxu0
    %v158 = vadd.f32 0.0, %v157
    %v159 = vpop.f32.mrf.mxu0
    %160 = vdwg.mxu0
    %v161 = vadd.f32 %v73, %v153
    %v162 = vadd.f32 %v74, %v158
    %163 = vst.msk [vmem:[#allocation2] sm:$0xff] %vm79, %v161
    %164 = vst.msk [vmem:[#allocation2 + $0x8] sm:$0xff] %vm79, %v162
    %v165 = vld [vmem:[#allocation3] sm:$0xff]
    %v166 = vld [vmem:[#allocation3 + $0x8] sm:$0xff]
    %v167 = vld [vmem:[#allocation9] sm:$0xff]
    %v168 = vld [vmem:[#allocation9 + $0x8] sm:$0xff]
    %v169 = vld [vmem:[#allocation9 + $0x10] sm:$0xff]
    %v170 = vld [vmem:[#allocation9 + $0x18] sm:$0xff]
    %171 = vmatprep.subr.mxu0 0.0
    %172 = vmatpush1.msra.mxu0 0.0
    %173 = vmatprep.subr.mxu0 0.0
    %174 = vmatpush1.msra.mxu0 0.0
    %175 = vmatprep.subr.mxu0 0.0
    %176 = vmatpush1.msra.mxu0 0.0
    %177 = vmatprep.subr.mxu0 0.0
    %178 = vmatpush1.msra.mxu0 0.0
    %179 = vmatprep.subr.mxu0 0.0
    %180 = vmatpush1.msra.mxu0 0.0
    %181 = vmatprep.subr.mxu0 0.0
    %182 = vmatpush1.msra.mxu0 0.0
    %183 = vmatprep.subr.mxu0 0.0
    %184 = vmatpush1.msra.mxu0 0.0
    %185 = vmatprep.subr.mxu0 0.0
    %186 = vmatpush1.msra.mxu0 0.0
    %187 = vmatprep.subr.mxu0 0.0
    %188 = vmatpush1.msra.mxu0 0.0
    %189 = vmatprep.subr.mxu0 0.0
    %190 = vmatpush1.msra.mxu0 0.0
    %191 = vmatprep.subr.mxu0 0.0
    %192 = vmatpush1.msra.mxu0 0.0
    %193 = vmatprep.subr.mxu0 0.0
    %194 = vmatpush1.msra.mxu0 0.0
    %195 = vmatprep.subr.mxu0 0.0
    %196 = vmatpush1.msra.mxu0 %v170
    %197 = vmatprep.subr.mxu0 0.0
    %198 = vmatpush1.msra.mxu0 %v169
    %199 = vmatprep.subr.mxu0 0.0
    %200 = vmatpush1.msra.mxu0 %v168
    %201 = vmatprep.subr.mxu0 0.0
    %202 = vmatpush1.msra.mxu0 %v167
    %203 = vmatprep.subr.mxu0 0.0
    %204 = vmatpush2.msra.mxu0 0.0
    %205 = vmatprep.subr.mxu0 0.0
    %206 = vmatpush2.msra.mxu0 0.0
    %207 = vmatprep.subr.mxu0 0.0
    %208 = vmatpush2.msra.mxu0 0.0
    %209 = vmatprep.subr.mxu0 0.0
    %210 = vmatpush2.msra.mxu0 0.0
    %211 = vmatprep.subr.mxu0 0.0
    %212 = vmatpush2.msra.mxu0 0.0
    %213 = vmatprep.subr.mxu0 0.0
    %214 = vmatpush2.msra.mxu0 0.0
    %215 = vmatprep.subr.mxu0 0.0
    %216 = vmatpush2.msra.mxu0 0.0
    %217 = vmatprep.subr.mxu0 0.0
    %218 = vmatpush2.msra.mxu0 0.0
    %219 = vmatprep.subr.mxu0 0.0
    %220 = vmatpush2.msra.mxu0 0.0
    %221 = vmatprep.subr.mxu0 0.0
    %222 = vmatpush2.msra.mxu0 0.0
    %223 = vmatprep.subr.mxu0 0.0
    %224 = vmatpush2.msra.mxu0 0.0
    %225 = vmatprep.subr.mxu0 0.0
    %226 = vmatpush2.msra.mxu0 0.0
    %227 = vmatprep.subr.mxu0 0.0
    %228 = vmatpush2.msra.mxu0 0.0
    %229 = vmatprep.subr.mxu0 0.0
    %230 = vmatpush2.msra.mxu0 0.0
    %231 = vmatprep.subr.mxu0 0.0
    %232 = vmatpush2.msra.mxu0 0.0
    %233 = vmatprep.subr.mxu0 0.0
    %234 = vmatpush2.msra.mxu0 0.0
    %235 = vmatprep.mubr.f32.mxu0 0.0
    %236 = vmatmul.mubr.f32.gmra.mxu0 %v81
    %v237 = vpop.f32.mrf.mxu0
    %v238 = vadd.f32 0.0, %v237
    %v239 = vpop.f32.mrf.mxu0
    %240 = vmatprep.mubr.f32.mxu0 0.0
    %241 = vmatmul.mubr.f32.gmra.mxu0 %v84
    %v242 = vpop.f32.mrf.mxu0
    %v243 = vadd.f32 0.0, %v242
    %v244 = vpop.f32.mrf.mxu0
    %245 = vdwg.mxu0
    %v246 = vadd.f32 %v165, %v238
    %v247 = vadd.f32 %v166, %v243
    %248 = vst.msk [vmem:[#allocation3] sm:$0xff] %vm79, %v246
    %249 = vst.msk [vmem:[#allocation3 + $0x8] sm:$0xff] %vm79, %v247
    // Predicated region
    $region38: #{glu_forward.1} parent=1 // pred_check
      %p250 = pneg %p62
    $region39: #{glu_forward.1} parent=1 // pred_check_branch
      %252 = sbr.rel (%p250) target = $region41
    $region40: #{glu_forward.1} parent=1 // pred_region
      %v253 = vld [vmem:[#allocation2] sm:$0xff]
      %v254 = vld [vmem:[#allocation2 + $0x8] sm:$0xff]
      %v255 = vld [vmem:[%s3] sm:$0x1]
      %v257 = vlaneseq
      %v258 = vshrl.u32 %v257, 7
      %v259 = vsub.s32 0, %v258
      %v260 = vrot.slane %v255, %v259
      %v262 = vadd.f32 %v253, %v260
      %v263 = vadd.f32 %v254, %v260
      %v264 = vld [vmem:[#allocation3] sm:$0xff]
      %v265 = vld [vmem:[#allocation3 + $0x8] sm:$0xff]
      %v266 = vld [vmem:[%s4] sm:$0x1]
      %v268 = vlaneseq
      %v269 = vshrl.u32 %v268, 7
      %v270 = vsub.s32 0, %v269
      %v271 = vrot.slane %v266, %v270
      %v273 = vadd.f32 %v264, %v271
      %v274 = vadd.f32 %v265, %v271
      %v275 = vxor.u32 %v273, 2147483648
      %v276 = vxor.u32 %v274, 2147483648
      %v277 = vmul.f32 %v275, 1.442695
      %v278 = vpow.pop %v277
      %v279 = vmul.f32 %v276, 1.442695
      %v280 = vpow.pop %v279
      %v281 = vadd.f32 %v278, 1.0
      %v282 = vadd.f32 %v280, 1.0
      %v283 = vrcp.pop %v281
      %v284 = vmul.f32 1.0, %v283
      %v285 = vrcp.pop %v282
      %v286 = vmul.f32 1.0, %v285
      %v287 = vmul.f32 %v262, %v284
      %v288 = vmul.f32 %v263, %v286
      %289 = vst.msk [vmem:[#allocation10] sm:$0xff] %vm79, %v287
      %290 = vst.msk [vmem:[#allocation10 + $0x8] sm:$0xff] %vm79, %v288
    $region41: #{glu_forward.1} parent=1 // pred_fallthru
      _
    // Predicated region
    $region42: #{glu_forward.1} parent=1 // pred_check
      _
    $region43: #{glu_forward.1} parent=1 // pred_check_branch
      %292 = sbr.rel (0) target = $region45
    $region44: #{glu_forward.1} parent=1 // pred_region
      %s294 = ssub.s32 256, 256
      %295 = vsyncadd [#allocation6], %s294
      %s296 = sshll.u32 [#allocation10], 4
      %s297 = int_to_ptr.vmem [resolvable:$true] %s296
      %302 = dma.vmem_to_hbm [thread:$0]  %s297, 256, %s5, [#allocation6], 128, 128, 8
    $region45: #{glu_forward.1} parent=1 // pred_fallthru
      _
    // Predicated region
    $region46: #{glu_forward.1} parent=1 // pred_check
      _
    $region47: #{glu_forward.1} parent=1 // pred_check_branch
      %304 = sbr.rel (0) target = $region49
    $region48: #{glu_forward.1} parent=1 // pred_region
      %305 = dma.done [#allocation6], 256
    $region49: #{glu_forward.1} parent=1 // pred_fallthru
      _
    %306 = vsyncpa [#allocation5], 1
    %307 = vsyncpa [#allocation8], 1
    %308 = vsyncpa [#allocation6], 1

</llo_original>
